<compile_context>
chip_gen: v7x
topology: tpu7x:2x2x1
jax: 0.10.0
libtpu: 0.0.40
codegen_flags: <defaults>
</compile_context>

<pallas_src>
import functools

import jax
import jax.numpy as jnp
from jax.experimental import pallas as pl
from jax.experimental.pallas import tpu as pltpu

K_PAD = 128     # padded im2col feature width (9 * c_in <= 128)
CH_PAD = 128    # padded hidden channels
N_PAD = 128     # padded class-logit width
NEG = float(jnp.finfo(jnp.float32).min)   # filler for unused logit columns


# ----------------------------------------------------------------------------
# Wrapper-side im2col for a 3x3 "same" conv: NCHW -> [B, H*W, K_PAD] (f32)
# Feature ordering: index = (dy*3 + dx) * c_in + c  (must match weight layout)
# ----------------------------------------------------------------------------
def im2col_3x3(x_nchw):
    x = jnp.transpose(x_nchw, (0, 2, 3, 1)).astype(jnp.float32)      # NHWC
    B, H, W, C = x.shape
    xp = jnp.pad(x, ((0, 0), (1, 1), (1, 1), (0, 0)))
    taps = [xp[:, dy:dy + H, dx:dx + W, :]
            for dy in range(3) for dx in range(3)]
    col = jnp.concatenate(taps, axis=-1).reshape(B, H * W, 9 * C)
    return jnp.pad(col, ((0, 0), (0, 0), (0, K_PAD - 9 * C)))


# ----------------------------------------------------------------------------
# Fused pipe kernel: model1 (conv+ReLU+GAP+head) -> argmax routing ->
# (conditionally) model2, all on the VMEM-resident im2col slab.
# mode: 0 = pipe (routing), 1 = always model1, 2 = always model2 (test paths).
# ----------------------------------------------------------------------------
def _pipe_kernel(col_ref, pool_ref, wc1_ref, bc1_ref, wh1_ref, bh1_ref,
                 wc2_ref, bc2_ref, wh2_ref, bh2_ref, o_ref,
                 *, n1, n2, num_dom, mode):
    bt, hw, k = col_ref.shape
    x2d = col_ref[...].reshape(bt * hw, k)         # bf16 [bt*hw, K_PAD]
    pool = pool_ref[...]                           # f32  [bt, bt*hw] (GAP matrix)

    def classifier(wc_ref, bc_ref, wh_ref, bh_ref, n_cls):
        # conv as one im2col MXU dot (bf16 operands, f32 accumulation)
        h = jnp.dot(x2d, wc_ref[...], preferred_element_type=jnp.float32)
        h = jnp.maximum(h + bc_ref[...], 0.0)                       # [bt*hw, CH]
        # global average pool via block-diagonal ones-matrix MXU dot (f32)
        pooled = jnp.dot(pool, h, preferred_element_type=jnp.float32)   # [bt, CH]
        # linear head (tiny, f32)
        logits = jnp.dot(pooled, wh_ref[...],
                         preferred_element_type=jnp.float32) + bh_ref[...]
        cols = jax.lax.broadcasted_iota(jnp.int32, logits.shape, 1)
        cols = cols.astype(jnp.float32)
        return jnp.where(cols < n_cls, logits, NEG), cols           # [bt, N_PAD]

    if mode == 2:                                   # test path: always model2
        l2, _ = classifier(wc2_ref, bc2_ref, wh2_ref, bh2_ref, n2)
        o_ref[...] = l2[:, None, :]
        return

    l1, cols = classifier(wc1_ref, bc1_ref, wh1_ref, bh1_ref, n1)
    o_ref[...] = l1[:, None, :]                     # default: model1 logits
    if mode == 1:                                   # test path: always model1
        return

    # per-image routing: first argmax index == num_dominant_classes?
    row_max = jnp.max(l1, axis=1, keepdims=True)                     # [bt, 1]
    first_idx = jnp.min(jnp.where(l1 == row_max, cols, float(N_PAD)),
                        axis=1, keepdims=True)                       # [bt, 1]
    need2 = first_idx == float(num_dom)                              # [bt, 1]
    routed = jnp.max(jnp.where(need2, 1.0, 0.0))                     # scalar

    @pl.when(routed > 0.0)
    def _():
        l2, _ = classifier(wc2_ref, bc2_ref, wh2_ref, bh2_ref, n2)
        o_ref[...] = jnp.where(need2[:, None, :], l2[:, None, :], l1[:, None, :])


def _pick_bt(batch):
    """Images per grid step: amortize step overhead but keep >=2 steps (v7x)."""
    if batch <= 1:
        return 1
    best = 1
    for bt in range(1, min(batch, 8) + 1):
        if batch % bt == 0 and batch // bt >= 2:
            best = bt
    return best


def pipe_pallas(col, params1, params2, *, n1, n2, num_dom, mode=0, bt=None):
    """col: [B, H*W, K_PAD] bf16 im2col input. Returns [B, N_PAD] f32 logits."""
    B, HW, K = col.shape
    if bt is None:
        bt = _pick_bt(B)
    assert B % bt == 0
    # block-diagonal GAP matrix: pooled = pool @ hidden
    pool = jnp.kron(jnp.eye(bt, dtype=jnp.float32),
                    jnp.full((1, HW), 1.0 / HW, jnp.float32))        # [bt, bt*HW]

    kernel = functools.partial(_pipe_kernel, n1=n1, n2=n2,
                               num_dom=num_dom, mode=mode)
    const2 = lambda b: (0, 0)
    out = pl.pallas_call(
        kernel,
        out_shape=jax.ShapeDtypeStruct((B, 1, N_PAD), jnp.float32),
        grid=(B // bt,),
        in_specs=[
            pl.BlockSpec((bt, HW, K), lambda b: (b, 0, 0)),          # images
            pl.BlockSpec((bt, bt * HW), const2),                     # GAP matrix
            pl.BlockSpec((K_PAD, CH_PAD), const2),                   # model1 conv W
            pl.BlockSpec((1, CH_PAD), const2),                       # model1 conv b
            pl.BlockSpec((CH_PAD, N_PAD), const2),                   # model1 head W
            pl.BlockSpec((1, N_PAD), const2),                        # model1 head b
            pl.BlockSpec((K_PAD, CH_PAD), const2),                   # model2 conv W
            pl.BlockSpec((1, CH_PAD), const2),                       # model2 conv b
            pl.BlockSpec((CH_PAD, N_PAD), const2),                   # model2 head W
            pl.BlockSpec((1, N_PAD), const2),                        # model2 head b
        ],
        out_specs=pl.BlockSpec((bt, 1, N_PAD), lambda b: (b, 0, 0)),
        compiler_params=pltpu.CompilerParams(
            dimension_semantics=("parallel",)),
    )(col, pool,
      params1["w_conv"], params1["b_conv"], params1["w_head"], params1["b_head"],
      params2["w_conv"], params2["b_conv"], params2["w_head"], params2["b_head"])
    return out[:, 0, :]                                              # [B, N_PAD]


# ----------------------------------------------------------------------------
# Parameter setup (logical weights zero-padded into lane-dense im2col layout)
# ----------------------------------------------------------------------------
def init_classifier_params(key, c_in, c_hidden, n_classes):
    assert 9 * c_in <= K_PAD and c_hidden <= CH_PAD and n_classes <= N_PAD
    k1, k2, k3, k4 = jax.random.split(key, 4)
    w_conv = 0.1 * jax.random.normal(k1, (3, 3, c_in, c_hidden), jnp.float32)
    b_conv = 0.1 * jax.random.normal(k2, (c_hidden,), jnp.float32)
    w_head = 0.1 * jax.random.normal(k3, (c_hidden, n_classes), jnp.float32)
    b_head = 0.1 * jax.random.normal(k4, (n_classes,), jnp.float32)

    # im2col weight layout: row index = (dy*3 + dx) * c_in + c
    w_col = w_conv.reshape(9 * c_in, c_hidden)
    w_conv_p = jnp.zeros((K_PAD, CH_PAD), jnp.float32)
    w_conv_p = w_conv_p.at[:9 * c_in, :c_hidden].set(w_col)
    b_conv_p = jnp.zeros((1, CH_PAD), jnp.float32).at[0, :c_hidden].set(b_conv)
    w_head_p = jnp.zeros((CH_PAD, N_PAD), jnp.float32)
    w_head_p = w_head_p.at[:c_hidden, :n_classes].set(w_head)
    b_head_p = jnp.zeros((1, N_PAD), jnp.float32).at[0, :n_classes].set(b_head)

    return {
        "w_conv": w_conv_p.astype(jnp.bfloat16),   # big MXU dot in bf16
        "b_conv": b_conv_p,
        "w_head": w_head_p,                        # tiny head dot stays f32
        "b_head": b_head_p,
    }


# ----------------------------------------------------------------------------
# Pipe forward (fully jitted; routing happens inside the single Pallas kernel)
# ----------------------------------------------------------------------------
def make_pipe_forward(n_classes1, n_classes2, num_dominant_classes):
    n_out = max(n_classes1, n_classes2)

    @jax.jit
    def forward(x_nchw, params1, params2):
        col = im2col_3x3(x_nchw).astype(jnp.bfloat16)
        out = pipe_pallas(col, params1, params2,
                          n1=n_classes1, n2=n_classes2,
                          num_dom=num_dominant_classes, mode=0)
        return out[:, :n_out]

    return forward


class PipeModelPallas:
    """JAX/Pallas port of PipeModel (inference only), one fused kernel."""

    def __init__(self, params1, params2, num_dominant_classes,
                 n_classes1, n_classes2):
        self.params1 = params1
        self.params2 = params2
        self.num_classes = num_dominant_classes
        self._forward = make_pipe_forward(n_classes1, n_classes2,
                                          num_dominant_classes)

    def __call__(self, x_nchw):
        return self._forward(x_nchw, self.params1, self.params2)


# ----------------------------------------------------------------------------
# Pure-JAX f32 reference for numerical validation of the fused kernel
# ----------------------------------------------------------------------------
def reference_classifier(x_nchw, params, n_classes):
    col = im2col_3x3(x_nchw)                                         # f32
    wc = params["w_conv"].astype(jnp.float32)
    h = jnp.maximum(jnp.einsum("bmk,kc->bmc", col, wc) + params["b_conv"][0], 0.0)
    gap = jnp.mean(h, axis=1)
    logits = gap @ params["w_head"] + params["b_head"][0]
    return logits[:, :n_classes]


# ----------------------------------------------------------------------------
if __name__ == "__main__":
    B, C_IN, H, W = 2, 4, 16, 16
    C_HIDDEN = 32
    NUM_DOMINANT = 4                  # model1 -> 5 logits (last index = "other")
    NUM_TOTAL = 10                    # model2 -> 10 logits
    N1, N2 = NUM_DOMINANT + 1, NUM_TOTAL

    key = jax.random.PRNGKey(0)
    kx, k1, k2 = jax.random.split(key, 3)
    x = jax.random.normal(kx, (B, C_IN, H, W), jnp.float32)          # NCHW input
    params1 = init_classifier_params(k1, C_IN, C_HIDDEN, N1)
    params2 = init_classifier_params(k2, C_IN, C_HIDDEN, N2)

    # Numerical check of both sub-model paths of the fused kernel vs f32 ref.
    col = im2col_3x3(x).astype(jnp.bfloat16)
    got1 = pipe_pallas(col, params1, params2, n1=N1, n2=N2,
                       num_dom=NUM_DOMINANT, mode=1)[:, :N1]
    got2 = pipe_pallas(col, params1, params2, n1=N1, n2=N2,
                       num_dom=NUM_DOMINANT, mode=2)[:, :N2]
    ref1 = reference_classifier(x, params1, N1)
    ref2 = reference_classifier(x, params2, N2)
    assert jnp.allclose(got1, ref1, atol=2e-2, rtol=2e-2), "model1 path mismatch"
    assert jnp.allclose(got2, ref2, atol=2e-2, rtol=2e-2), "model2 path mismatch"

    # Full fused pipe (single kernel, in-kernel routing), jitted end-to-end.
    model = PipeModelPallas(params1, params2, NUM_DOMINANT, N1, N2)
    out = model(x)
    jax.block_until_ready(out)
    assert out.shape == (B, NUM_TOTAL)

    # Each row must match either model1 logits (NEG-padded to width 10) or
    # model2 logits, i.e. the kernel's routing produced a consistent result.
    ref1_wide = jnp.concatenate(
        [ref1, jnp.full((B, N2 - N1), NEG, jnp.float32)], axis=1)
    tol1 = 2e-2 + 2e-2 * jnp.abs(ref1_wide)
    tol2 = 2e-2 + 2e-2 * jnp.abs(ref2)
    ok1 = jnp.all(jnp.abs(out - ref1_wide) <= tol1, axis=1)
    ok2 = jnp.all(jnp.abs(out - ref2) <= tol2, axis=1)
    assert bool(jnp.all(ok1 | ok2)), "pipe output matches neither sub-model"
    assert bool(jnp.all(jnp.isfinite(out[:, :N1])))

    print("KERNEL_OK")
</pallas_src>

<mosaic_0001>
module attributes {stable_mosaic.version = 11 : i64} {
  func.func @_pipe_kernel(%arg0: i32, %arg1: memref<1x256x128xbf16, #tpu.memory_space<vmem>>, %arg2: memref<1x256xf32, #tpu.memory_space<vmem>>, %arg3: memref<128x128xbf16, #tpu.memory_space<vmem>>, %arg4: memref<1x128xf32, #tpu.memory_space<vmem>>, %arg5: memref<128x128xf32, #tpu.memory_space<vmem>>, %arg6: memref<1x128xf32, #tpu.memory_space<vmem>>, %arg7: memref<128x128xbf16, #tpu.memory_space<vmem>>, %arg8: memref<1x128xf32, #tpu.memory_space<vmem>>, %arg9: memref<128x128xf32, #tpu.memory_space<vmem>>, %arg10: memref<1x128xf32, #tpu.memory_space<vmem>>, %arg11: memref<1x1x128xf32, #tpu.memory_space<vmem>>) attributes {dimension_semantics = [#tpu.dimension_semantics<parallel>], iteration_bounds = array<i64: 2>, scalar_prefetch = 0 : i64, scratch_operands = 0 : i64, tpu.core_type = #tpu.core_type<tc>, window_params = [{transform_indices = @transform_0, window_bounds = array<i64: 1, 256, 128>}, {pipeline_mode = #tpu.pipeline_mode<synchronous>, transform_indices = @transform_1, window_bounds = array<i64: 1, 256>}, {pipeline_mode = #tpu.pipeline_mode<synchronous>, transform_indices = @transform_2, window_bounds = array<i64: 128, 128>}, {pipeline_mode = #tpu.pipeline_mode<synchronous>, transform_indices = @transform_3, window_bounds = array<i64: 1, 128>}, {pipeline_mode = #tpu.pipeline_mode<synchronous>, transform_indices = @transform_4, window_bounds = array<i64: 128, 128>}, {pipeline_mode = #tpu.pipeline_mode<synchronous>, transform_indices = @transform_5, window_bounds = array<i64: 1, 128>}, {pipeline_mode = #tpu.pipeline_mode<synchronous>, transform_indices = @transform_6, window_bounds = array<i64: 128, 128>}, {pipeline_mode = #tpu.pipeline_mode<synchronous>, transform_indices = @transform_7, window_bounds = array<i64: 1, 128>}, {pipeline_mode = #tpu.pipeline_mode<synchronous>, transform_indices = @transform_8, window_bounds = array<i64: 128, 128>}, {pipeline_mode = #tpu.pipeline_mode<synchronous>, transform_indices = @transform_9, window_bounds = array<i64: 1, 128>}, {transform_indices = @transform_10, window_bounds = array<i64: 1, 1, 128>}]} {
    %c0 = arith.constant 0 : index
    %c0_0 = arith.constant 0 : index
    %c0_1 = arith.constant 0 : index
    %0 = vector.load %arg1[%c0, %c0_0, %c0_1] : memref<1x256x128xbf16, #tpu.memory_space<vmem>>, vector<1x256x128xbf16>
    %1 = vector.shape_cast %0 : vector<1x256x128xbf16> to vector<256x128xbf16>
    %c0_2 = arith.constant 0 : index
    %c0_3 = arith.constant 0 : index
    %2 = vector.load %arg2[%c0_2, %c0_3] : memref<1x256xf32, #tpu.memory_space<vmem>>, vector<1x256xf32>
    %c0_4 = arith.constant 0 : index
    %c0_5 = arith.constant 0 : index
    %3 = vector.load %arg3[%c0_4, %c0_5] : memref<128x128xbf16, #tpu.memory_space<vmem>>, vector<128x128xbf16>
    %cst = arith.constant dense<0.000000e+00> : vector<256x128xf32>
    %4 = tpu.matmul %1, %3, %cst {dimension_numbers = #tpu.dot_dimension_numbers<[1], [0], [0], [1], [0, 0, 1, 1], [], []>} : vector<256x128xbf16>, vector<128x128xbf16>, vector<256x128xf32> -> vector<256x128xf32>
    %c0_6 = arith.constant 0 : index
    %c0_7 = arith.constant 0 : index
    %5 = vector.load %arg4[%c0_6, %c0_7] : memref<1x128xf32, #tpu.memory_space<vmem>>, vector<1x128xf32>
    %6 = vector.broadcast %5 : vector<1x128xf32> to vector<256x128xf32>
    %7 = arith.addf %4, %6 : vector<256x128xf32>
    %cst_8 = arith.constant 0.000000e+00 : f32
    %8 = vector.broadcast %cst_8 : f32 to vector<256x128xf32>
    %9 = arith.maximumf %7, %8 : vector<256x128xf32>
    %cst_9 = arith.constant dense<0.000000e+00> : vector<1x128xf32>
    %10 = tpu.matmul %2, %9, %cst_9 {dimension_numbers = #tpu.dot_dimension_numbers<[1], [0], [0], [1], [0, 0, 1, 1], [], []>} : vector<1x256xf32>, vector<256x128xf32>, vector<1x128xf32> -> vector<1x128xf32>
    %c0_10 = arith.constant 0 : index
    %c0_11 = arith.constant 0 : index
    %11 = vector.load %arg5[%c0_10, %c0_11] : memref<128x128xf32, #tpu.memory_space<vmem>>, vector<128x128xf32>
    %cst_12 = arith.constant dense<0.000000e+00> : vector<1x128xf32>
    %12 = tpu.matmul %10, %11, %cst_12 {dimension_numbers = #tpu.dot_dimension_numbers<[1], [0], [0], [1], [0, 0, 1, 1], [], []>} : vector<1x128xf32>, vector<128x128xf32>, vector<1x128xf32> -> vector<1x128xf32>
    %c0_13 = arith.constant 0 : index
    %c0_14 = arith.constant 0 : index
    %13 = vector.load %arg6[%c0_13, %c0_14] : memref<1x128xf32, #tpu.memory_space<vmem>>, vector<1x128xf32>
    %14 = arith.addf %12, %13 : vector<1x128xf32>
    %15 = tpu.iota {dimensions = array<i32: 1>} : vector<1x128xi32>
    %16 = arith.sitofp %15 : vector<1x128xi32> to vector<1x128xf32>
    %cst_15 = arith.constant 5.000000e+00 : f32
    %17 = vector.broadcast %cst_15 : f32 to vector<1x128xf32>
    %18 = arith.cmpf olt, %16, %17 : vector<1x128xf32>
    %cst_16 = arith.constant -3.40282347E+38 : f32
    %19 = vector.broadcast %cst_16 : f32 to vector<1x128xf32>
    %20 = arith.select %18, %14, %19 : vector<1x128xi1>, vector<1x128xf32>
    %21 = vector.shape_cast %20 : vector<1x128xf32> to vector<1x1x128xf32>
    %c0_17 = arith.constant 0 : index
    %c0_18 = arith.constant 0 : index
    %c0_19 = arith.constant 0 : index
    %22 = vector.load %arg11[%c0_17, %c0_18, %c0_19] : memref<1x1x128xf32, #tpu.memory_space<vmem>>, vector<1x1x128xf32>
    tpu.vector_store %arg11[%c0_17, %c0_18, %c0_19], %21 {strides = array<i32>} : memref<1x1x128xf32, #tpu.memory_space<vmem>>, vector<1x1x128xf32>,
    return
  }
  func.func @transform_0(%arg0: i32) -> (i32, i32, i32) {
    %c0_i32 = arith.constant 0 : i32
    %c0_i32_0 = arith.constant 0 : i32
    %c0_i32_1 = arith.constant 0 : i32
    return %arg0, %c0_i32, %c0_i32_0 : i32, i32, i32
  }
  func.func @transform_1(%arg0: i32) -> (i32, i32) {
    %c0_i32 = arith.constant 0 : i32
    %c0_i32_0 = arith.constant 0 : i32
    %c0_i32_1 = arith.constant 0 : i32
    return %c0_i32, %c0_i32_0 : i32, i32
  }
  func.func @transform_2(%arg0: i32) -> (i32, i32) {
    %c0_i32 = arith.constant 0 : i32
    %c0_i32_0 = arith.constant 0 : i32
    %c0_i32_1 = arith.constant 0 : i32
    return %c0_i32, %c0_i32_0 : i32, i32
  }
  func.func @transform_3(%arg0: i32) -> (i32, i32) {
    %c0_i32 = arith.constant 0 : i32
    %c0_i32_0 = arith.constant 0 : i32
    %c0_i32_1 = arith.constant 0 : i32
    return %c0_i32, %c0_i32_0 : i32, i32
  }
  func.func @transform_4(%arg0: i32) -> (i32, i32) {
    %c0_i32 = arith.constant 0 : i32
    %c0_i32_0 = arith.constant 0 : i32
    %c0_i32_1 = arith.constant 0 : i32
    return %c0_i32, %c0_i32_0 : i32, i32
  }
  func.func @transform_5(%arg0: i32) -> (i32, i32) {
    %c0_i32 = arith.constant 0 : i32
    %c0_i32_0 = arith.constant 0 : i32
    %c0_i32_1 = arith.constant 0 : i32
    return %c0_i32, %c0_i32_0 : i32, i32
  }
  func.func @transform_6(%arg0: i32) -> (i32, i32) {
    %c0_i32 = arith.constant 0 : i32
    %c0_i32_0 = arith.constant 0 : i32
    %c0_i32_1 = arith.constant 0 : i32
    return %c0_i32, %c0_i32_0 : i32, i32
  }
  func.func @transform_7(%arg0: i32) -> (i32, i32) {
    %c0_i32 = arith.constant 0 : i32
    %c0_i32_0 = arith.constant 0 : i32
    %c0_i32_1 = arith.constant 0 : i32
    return %c0_i32, %c0_i32_0 : i32, i32
  }
  func.func @transform_8(%arg0: i32) -> (i32, i32) {
    %c0_i32 = arith.constant 0 : i32
    %c0_i32_0 = arith.constant 0 : i32
    %c0_i32_1 = arith.constant 0 : i32
    return %c0_i32, %c0_i32_0 : i32, i32
  }
  func.func @transform_9(%arg0: i32) -> (i32, i32) {
    %c0_i32 = arith.constant 0 : i32
    %c0_i32_0 = arith.constant 0 : i32
    %c0_i32_1 = arith.constant 0 : i32
    return %c0_i32, %c0_i32_0 : i32, i32
  }
  func.func @transform_10(%arg0: i32) -> (i32, i32, i32) {
    %c0_i32 = arith.constant 0 : i32
    %c0_i32_0 = arith.constant 0 : i32
    %c0_i32_1 = arith.constant 0 : i32
    return %arg0, %c0_i32, %c0_i32_0 : i32, i32, i32
  }
}

</mosaic_0001>

<llo_original>
// kernel: tpu_custom_call.1
$region0: #{tpu_custom_call.1}
  #allocation0 [shape = 'u32[]', space=smem, size = 0x4, offset = 0x4, fixed_abs, tag = 'smem constant byte address 0x4 - core index']
  #allocation1 [shape = 'u32[144,128]{1,0:T(1,128)}', space=vmem, size = 0x12000, scoped, tag = 'internal scratch']
  %s0 = inlined_call_operand.hbm [shape: bf16[2,256,128], index: 0, kind: input, shape index: {}]
  %s1 = inlined_call_operand.vmem [shape: f32[1,256], index: 1, kind: input, shape index: {}]
  %s2 = inlined_call_operand.hbm [shape: bf16[128,128], index: 2, kind: input, shape index: {}]
  %s3 = inlined_call_operand.vmem [shape: f32[1,128], index: 3, kind: input, shape index: {}]
  %s4 = inlined_call_operand.hbm [shape: f32[128,128], index: 4, kind: input, shape index: {}]
  %s5 = inlined_call_operand.vmem [shape: f32[1,128], index: 5, kind: input, shape index: {}]
  %s6 = inlined_call_operand.hbm [shape: bf16[128,128], index: 6, kind: input, shape index: {}]
  %s7 = inlined_call_operand.vmem [shape: f32[1,128], index: 7, kind: input, shape index: {}]
  %s8 = inlined_call_operand.hbm [shape: f32[128,128], index: 8, kind: input, shape index: {}]
  %s9 = inlined_call_operand.vmem [shape: f32[1,128], index: 9, kind: input, shape index: {}]
  %s10 = inlined_call_operand.hbm [shape: f32[2,1,128], index: 10, kind: output, shape index: {}]
  %s11 = sld [smem:[#allocation0]]
  $region93: #{tpu_custom_call.1} parent=0
    _
  %s13 = ssub.s32 1, %s11
  %s14 = scalar_select 0, %s13, %s11
  $region1: #{tpu_custom_call.1} parent=0
    #allocation2 [shape = 'u8[131072]{0}', space=vmem, size = 0x20000, scoped, tag = 'input window, operand 0']
    #allocation3 [shape = 's32[2]{0}', space=sflag, size = 0x8, scoped, tag = 'scoped memory for tpu_custom_call.1']
    #allocation4 [shape = 's32[2]{0}', space=sflag, size = 0x8, scoped, tag = 'scoped memory for tpu_custom_call.1']
    #allocation5 [shape = 'u8[32768]{0}', space=vmem, size = 0x8000, scoped, tag = 'input window, operand 2, single buffered']
    #allocation6 [shape = 's32[1]{0}', space=sflag, size = 0x4, scoped, tag = 'scoped memory for tpu_custom_call.1']
    #allocation7 [shape = 'u8[65536]{0}', space=vmem, size = 0x10000, scoped, tag = 'input window, operand 4, single buffered']
    #allocation8 [shape = 'u8[32768]{0}', space=vmem, size = 0x8000, scoped, tag = 'input window, operand 6, single buffered']
    #allocation9 [shape = 's32[1]{0}', space=sflag, size = 0x4, scoped, tag = 'scoped memory for tpu_custom_call.1']
    #allocation10 [shape = 'u8[65536]{0}', space=vmem, size = 0x10000, scoped, tag = 'input window, operand 8, single buffered']
    #allocation11 [shape = 'u8[1024]{0}', space=vmem, size = 0x400, scoped, tag = 'output window, operand 0']
    %15 = vsyncpa [#allocation3], 0
    %s16 = scalar_lea.sflag [#allocation3], 1
    %17 = vsyncpa %s16, 0
    %18 = vsyncpa [#allocation6], 0
    %19 = vsyncpa [#allocation9], 0
    %20 = vsyncpa [#allocation4], 0
    %s21 = scalar_lea.sflag [#allocation4], 1
    %22 = vsyncpa %s21, 0
    loop: start=0, step=1, limit=4
    $region2: #{tpu_custom_call.1} parent=1 // loop_pre_header
      _
    $region3: #{tpu_custom_call.1} parent=1 // loop_header
      %s24 = sphi 0, %s28
      %p25 = scmp.ge.s32.totalorder %s24, 4
      %s34 = sphi 0, %s36
      %s37 = sphi 0, %s34
      %s38 = sphi 0, %s37
      %s54 = sphi 0, %s38
      %s58 = sphi 0, %s58
      %s60 = sphi 0, %s58
      %s61 = sphi 0, %s60
      %s75 = sphi 0, %s61
      %s79 = sphi 0, %s79
      %s81 = sphi 0, %s79
      %s82 = sphi 0, %s81
      %s96 = sphi 0, %s82
      %s100 = sphi 0, %s100
      %s102 = sphi 0, %s100
      %s103 = sphi 0, %s102
      %s117 = sphi 0, %s103
      %s121 = sphi 0, %s121
      %s123 = sphi 0, %s121
      %s124 = sphi 0, %s123
      %s138 = sphi 0, %s124
      %s142 = sphi 0, %s142
      %s144 = sphi 0, %s142
      %s145 = sphi 0, %s144
      %s159 = sphi 0, %s145
      %s163 = sphi 0, %s163
      %s165 = sphi 0, %s163
      %s166 = sphi 0, %s165
      %s180 = sphi 0, %s166
      %s184 = sphi 0, %s184
      %s186 = sphi 0, %s184
      %s187 = sphi 0, %s186
      %s201 = sphi 0, %s187
      %s205 = sphi 0, %s205
      %s207 = sphi 0, %s205
      %s208 = sphi 0, %s207
      %s222 = sphi 0, %s208
      %s226 = sphi 0, %s226
      %s228 = sphi 0, %s226
      %s229 = sphi 0, %s228
      %s243 = sphi 0, %s229
      %s249 = sphi 0, %s251
      %s252 = sphi 0, %s249
      %s253 = sphi 0, %s252
      %s269 = sphi 0, %s253
    $region4: #{tpu_custom_call.1} parent=1 // loop_header_branch
      %27 = sbr.rel (%p25) target = $region8
    $region5: #{tpu_custom_call.1} parent=1 // loop_body
      %s29 = ssub.s32 %s24, 1
      %s30 = ssub.s32 %s24, 2
      %s31 = sadd.s32 %s24, 1
      %s32 = ssub.s32 %s24, %s31
      %p33 = scmp.eq.s32.totalorder %s32, 0
      %s35 = sadd.s32 %s34, 1
      %s36 = scalar_select %p33, %s34, %s35
      %p39 = pneg %p33
      %p40 = scmp.eq.s32.totalorder %s24, 1
      %p41 = por %p39, %p40
      %p42 = scmp.ne.s32.totalorder %s34, %s37
      %p43 = scmp.eq.s32.totalorder %s24, 0
      %p44 = por %p42, %p43
      %p45 = scmp.ne.s32.totalorder %s34, %s37
      %p46 = scmp.eq.s32.totalorder %s29, 1
      %p47 = por %p45, %p46
      %p48 = scmp.ne.s32.totalorder %s37, %s38
      %p49 = scmp.eq.s32.totalorder %s29, 0
      %p50 = por %p48, %p49
      %p51 = scmp.ne.s32.totalorder %s37, %s38
      %p52 = scmp.eq.s32.totalorder %s30, 1
      %p53 = por %p51, %p52
      %p55 = scmp.ne.s32.totalorder %s38, %s54
      %p56 = scmp.eq.s32.totalorder %s30, 0
      %p57 = por %p55, %p56
      %s59 = sadd.s32 %s58, 1
      %p62 = scmp.eq.s32.totalorder %s24, 1
      %p63 = scmp.ne.s32.totalorder %s58, %s60
      %p64 = scmp.eq.s32.totalorder %s24, 0
      %p65 = por %p63, %p64
      %p66 = scmp.ne.s32.totalorder %s58, %s60
      %p67 = scmp.eq.s32.totalorder %s29, 1
      %p68 = por %p66, %p67
      %p69 = scmp.ne.s32.totalorder %s60, %s61
      %p70 = scmp.eq.s32.totalorder %s29, 0
      %p71 = por %p69, %p70
      %p72 = scmp.ne.s32.totalorder %s60, %s61
      %p73 = scmp.eq.s32.totalorder %s30, 1
      %p74 = por %p72, %p73
      %p76 = scmp.ne.s32.totalorder %s61, %s75
      %p77 = scmp.eq.s32.totalorder %s30, 0
      %p78 = por %p76, %p77
      %s80 = sadd.s32 %s79, 1
      %p83 = scmp.eq.s32.totalorder %s24, 1
      %p84 = scmp.ne.s32.totalorder %s79, %s81
      %p85 = scmp.eq.s32.totalorder %s24, 0
      %p86 = por %p84, %p85
      %p87 = scmp.ne.s32.totalorder %s79, %s81
      %p88 = scmp.eq.s32.totalorder %s29, 1
      %p89 = por %p87, %p88
      %p90 = scmp.ne.s32.totalorder %s81, %s82
      %p91 = scmp.eq.s32.totalorder %s29, 0
      %p92 = por %p90, %p91
      %p93 = scmp.ne.s32.totalorder %s81, %s82
      %p94 = scmp.eq.s32.totalorder %s30, 1
      %p95 = por %p93, %p94
      %p97 = scmp.ne.s32.totalorder %s82, %s96
      %p98 = scmp.eq.s32.totalorder %s30, 0
      %p99 = por %p97, %p98
      %s101 = sadd.s32 %s100, 1
      %p104 = scmp.eq.s32.totalorder %s24, 1
      %p105 = scmp.ne.s32.totalorder %s100, %s102
      %p106 = scmp.eq.s32.totalorder %s24, 0
      %p107 = por %p105, %p106
      %p108 = scmp.ne.s32.totalorder %s100, %s102
      %p109 = scmp.eq.s32.totalorder %s29, 1
      %p110 = por %p108, %p109
      %p111 = scmp.ne.s32.totalorder %s102, %s103
      %p112 = scmp.eq.s32.totalorder %s29, 0
      %p113 = por %p111, %p112
      %p114 = scmp.ne.s32.totalorder %s102, %s103
      %p115 = scmp.eq.s32.totalorder %s30, 1
      %p116 = por %p114, %p115
      %p118 = scmp.ne.s32.totalorder %s103, %s117
      %p119 = scmp.eq.s32.totalorder %s30, 0
      %p120 = por %p118, %p119
      %s122 = sadd.s32 %s121, 1
      %p125 = scmp.eq.s32.totalorder %s24, 1
      %p126 = scmp.ne.s32.totalorder %s121, %s123
      %p127 = scmp.eq.s32.totalorder %s24, 0
      %p128 = por %p126, %p127
      %p129 = scmp.ne.s32.totalorder %s121, %s123
      %p130 = scmp.eq.s32.totalorder %s29, 1
      %p131 = por %p129, %p130
      %p132 = scmp.ne.s32.totalorder %s123, %s124
      %p133 = scmp.eq.s32.totalorder %s29, 0
      %p134 = por %p132, %p133
      %p135 = scmp.ne.s32.totalorder %s123, %s124
      %p136 = scmp.eq.s32.totalorder %s30, 1
      %p137 = por %p135, %p136
      %p139 = scmp.ne.s32.totalorder %s124, %s138
      %p140 = scmp.eq.s32.totalorder %s30, 0
      %p141 = por %p139, %p140
      %s143 = sadd.s32 %s142, 1
      %p146 = scmp.eq.s32.totalorder %s24, 1
      %p147 = scmp.ne.s32.totalorder %s142, %s144
      %p148 = scmp.eq.s32.totalorder %s24, 0
      %p149 = por %p147, %p148
      %p150 = scmp.ne.s32.totalorder %s142, %s144
      %p151 = scmp.eq.s32.totalorder %s29, 1
      %p152 = por %p150, %p151
      %p153 = scmp.ne.s32.totalorder %s144, %s145
      %p154 = scmp.eq.s32.totalorder %s29, 0
      %p155 = por %p153, %p154
      %p156 = scmp.ne.s32.totalorder %s144, %s145
      %p157 = scmp.eq.s32.totalorder %s30, 1
      %p158 = por %p156, %p157
      %p160 = scmp.ne.s32.totalorder %s145, %s159
      %p161 = scmp.eq.s32.totalorder %s30, 0
      %p162 = por %p160, %p161
      %s164 = sadd.s32 %s163, 1
      %p167 = scmp.eq.s32.totalorder %s24, 1
      %p168 = scmp.ne.s32.totalorder %s163, %s165
      %p169 = scmp.eq.s32.totalorder %s24, 0
      %p170 = por %p168, %p169
      %p171 = scmp.ne.s32.totalorder %s163, %s165
      %p172 = scmp.eq.s32.totalorder %s29, 1
      %p173 = por %p171, %p172
      %p174 = scmp.ne.s32.totalorder %s165, %s166
      %p175 = scmp.eq.s32.totalorder %s29, 0
      %p176 = por %p174, %p175
      %p177 = scmp.ne.s32.totalorder %s165, %s166
      %p178 = scmp.eq.s32.totalorder %s30, 1
      %p179 = por %p177, %p178
      %p181 = scmp.ne.s32.totalorder %s166, %s180
      %p182 = scmp.eq.s32.totalorder %s30, 0
      %p183 = por %p181, %p182
      %s185 = sadd.s32 %s184, 1
      %p188 = scmp.eq.s32.totalorder %s24, 1
      %p189 = scmp.ne.s32.totalorder %s184, %s186
      %p190 = scmp.eq.s32.totalorder %s24, 0
      %p191 = por %p189, %p190
      %p192 = scmp.ne.s32.totalorder %s184, %s186
      %p193 = scmp.eq.s32.totalorder %s29, 1
      %p194 = por %p192, %p193
      %p195 = scmp.ne.s32.totalorder %s186, %s187
      %p196 = scmp.eq.s32.totalorder %s29, 0
      %p197 = por %p195, %p196
      %p198 = scmp.ne.s32.totalorder %s186, %s187
      %p199 = scmp.eq.s32.totalorder %s30, 1
      %p200 = por %p198, %p199
      %p202 = scmp.ne.s32.totalorder %s187, %s201
      %p203 = scmp.eq.s32.totalorder %s30, 0
      %p204 = por %p202, %p203
      %s206 = sadd.s32 %s205, 1
      %p209 = scmp.eq.s32.totalorder %s24, 1
      %p210 = scmp.ne.s32.totalorder %s205, %s207
      %p211 = scmp.eq.s32.totalorder %s24, 0
      %p212 = por %p210, %p211
      %p213 = scmp.ne.s32.totalorder %s205, %s207
      %p214 = scmp.eq.s32.totalorder %s29, 1
      %p215 = por %p213, %p214
      %p216 = scmp.ne.s32.totalorder %s207, %s208
      %p217 = scmp.eq.s32.totalorder %s29, 0
      %p218 = por %p216, %p217
      %p219 = scmp.ne.s32.totalorder %s207, %s208
      %p220 = scmp.eq.s32.totalorder %s30, 1
      %p221 = por %p219, %p220
      %p223 = scmp.ne.s32.totalorder %s208, %s222
      %p224 = scmp.eq.s32.totalorder %s30, 0
      %p225 = por %p223, %p224
      %s227 = sadd.s32 %s226, 1
      %p230 = scmp.eq.s32.totalorder %s24, 1
      %p231 = scmp.ne.s32.totalorder %s226, %s228
      %p232 = scmp.eq.s32.totalorder %s24, 0
      %p233 = por %p231, %p232
      %p234 = scmp.ne.s32.totalorder %s226, %s228
      %p235 = scmp.eq.s32.totalorder %s29, 1
      %p236 = por %p234, %p235
      %p237 = scmp.ne.s32.totalorder %s228, %s229
      %p238 = scmp.eq.s32.totalorder %s29, 0
      %p239 = por %p237, %p238
      %p240 = scmp.ne.s32.totalorder %s228, %s229
      %p241 = scmp.eq.s32.totalorder %s30, 1
      %p242 = por %p240, %p241
      %p244 = scmp.ne.s32.totalorder %s229, %s243
      %p245 = scmp.eq.s32.totalorder %s30, 0
      %p246 = por %p244, %p245
      %s247 = ssub.s32 %s24, %s31
      %p248 = scmp.eq.s32.totalorder %s247, 0
      %s250 = sadd.s32 %s249, 1
      %s251 = scalar_select %p248, %s249, %s250
      %p254 = pneg %p248
      %p255 = scmp.eq.s32.totalorder %s24, 1
      %p256 = por %p254, %p255
      %p257 = scmp.ne.s32.totalorder %s249, %s252
      %p258 = scmp.eq.s32.totalorder %s24, 0
      %p259 = por %p257, %p258
      %p260 = scmp.ne.s32.totalorder %s249, %s252
      %p261 = scmp.eq.s32.totalorder %s29, 1
      %p262 = por %p260, %p261
      %p263 = scmp.ne.s32.totalorder %s252, %s253
      %p264 = scmp.eq.s32.totalorder %s29, 0
      %p265 = por %p263, %p264
      %p266 = scmp.ne.s32.totalorder %s252, %s253
      %p267 = scmp.eq.s32.totalorder %s30, 1
      %p268 = por %p266, %p267
      %p270 = scmp.ne.s32.totalorder %s253, %s269
      %p271 = scmp.eq.s32.totalorder %s30, 0
      %p272 = por %p270, %p271
      %p273 = scmp.le.s32.totalorder 1, %s24
      %p274 = scmp.lt.s32.totalorder %s24, 3
      %p275 = pnand %p273, %p274
      %p276 = pneg %p275
      // Predicated region
      $region9: #{tpu_custom_call.1} parent=5 // pred_check
        _
      $region10: #{tpu_custom_call.1} parent=5 // pred_check_branch
        %278 = sbr.rel (%p275) target = $region12
      $region11: #{tpu_custom_call.1} parent=5 // pred_region
        %s279 = ssub.s32 %s24, 1
        // Predicated region
        $region13: #{tpu_custom_call.1} parent=11 // pred_check
          %p280 = pneg %p71
        $region14: #{tpu_custom_call.1} parent=11 // pred_check_branch
          %282 = sbr.rel (%p280) target = $region16
        $region15: #{tpu_custom_call.1} parent=11 // pred_region
          _
        $region16: #{tpu_custom_call.1} parent=11 // pred_fallthru
          _
        // Predicated region
        $region17: #{tpu_custom_call.1} parent=11 // pred_check
          %p283 = pneg %p92
        $region18: #{tpu_custom_call.1} parent=11 // pred_check_branch
          %285 = sbr.rel (%p283) target = $region20
        $region19: #{tpu_custom_call.1} parent=11 // pred_region
          %s287 = ssub.s32 1024, 1024
          %288 = vsyncadd [#allocation6], %s287
          %s289 = sshll.u32 [#allocation5], 4
          %s290 = int_to_ptr.vmem [resolvable:$true] %s289
          %295 = dma.hbm_to_vmem [thread:$0]  %s2, 1024, %s290, [#allocation6], 64, 64, 4
        $region20: #{tpu_custom_call.1} parent=11 // pred_fallthru
          _
        // Predicated region
        $region21: #{tpu_custom_call.1} parent=11 // pred_check
          %p296 = pneg %p113
        $region22: #{tpu_custom_call.1} parent=11 // pred_check_branch
          %298 = sbr.rel (%p296) target = $region24
        $region23: #{tpu_custom_call.1} parent=11 // pred_region
          _
        $region24: #{tpu_custom_call.1} parent=11 // pred_fallthru
          _
        // Predicated region
        $region25: #{tpu_custom_call.1} parent=11 // pred_check
          %p299 = pneg %p134
        $region26: #{tpu_custom_call.1} parent=11 // pred_check_branch
          %301 = sbr.rel (%p299) target = $region28
        $region27: #{tpu_custom_call.1} parent=11 // pred_region
          %s303 = ssub.s32 2048, 2048
          %304 = vsyncadd [#allocation6], %s303
          %s305 = sshll.u32 [#allocation7], 4
          %s306 = int_to_ptr.vmem [resolvable:$true] %s305
          %311 = dma.hbm_to_vmem [thread:$0]  %s4, 2048, %s306, [#allocation6], 128, 128, 8
        $region28: #{tpu_custom_call.1} parent=11 // pred_fallthru
          _
        // Predicated region
        $region29: #{tpu_custom_call.1} parent=11 // pred_check
          %p312 = pneg %p155
        $region30: #{tpu_custom_call.1} parent=11 // pred_check_branch
          %314 = sbr.rel (%p312) target = $region32
        $region31: #{tpu_custom_call.1} parent=11 // pred_region
          _
        $region32: #{tpu_custom_call.1} parent=11 // pred_fallthru
          _
        // Predicated region
        $region33: #{tpu_custom_call.1} parent=11 // pred_check
          %p315 = pneg %p176
        $region34: #{tpu_custom_call.1} parent=11 // pred_check_branch
          %317 = sbr.rel (%p315) target = $region36
        $region35: #{tpu_custom_call.1} parent=11 // pred_region
          %s319 = ssub.s32 1024, 1024
          %320 = vsyncadd [#allocation9], %s319
          %s321 = sshll.u32 [#allocation8], 4
          %s322 = int_to_ptr.vmem [resolvable:$true] %s321
          %327 = dma.hbm_to_vmem [thread:$0]  %s6, 1024, %s322, [#allocation9], 64, 64, 4
        $region36: #{tpu_custom_call.1} parent=11 // pred_fallthru
          _
        // Predicated region
        $region37: #{tpu_custom_call.1} parent=11 // pred_check
          %p328 = pneg %p197
        $region38: #{tpu_custom_call.1} parent=11 // pred_check_branch
          %330 = sbr.rel (%p328) target = $region40
        $region39: #{tpu_custom_call.1} parent=11 // pred_region
          _
        $region40: #{tpu_custom_call.1} parent=11 // pred_fallthru
          _
        // Predicated region
        $region41: #{tpu_custom_call.1} parent=11 // pred_check
          %p331 = pneg %p218
        $region42: #{tpu_custom_call.1} parent=11 // pred_check_branch
          %333 = sbr.rel (%p331) target = $region44
        $region43: #{tpu_custom_call.1} parent=11 // pred_region
          %s335 = ssub.s32 2048, 2048
          %336 = vsyncadd [#allocation9], %s335
          %s337 = sshll.u32 [#allocation10], 4
          %s338 = int_to_ptr.vmem [resolvable:$true] %s337
          %343 = dma.hbm_to_vmem [thread:$0]  %s8, 2048, %s338, [#allocation9], 128, 128, 8
        $region44: #{tpu_custom_call.1} parent=11 // pred_fallthru
          _
        // Predicated region
        $region45: #{tpu_custom_call.1} parent=11 // pred_check
          %p344 = pneg %p239
        $region46: #{tpu_custom_call.1} parent=11 // pred_check_branch
          %346 = sbr.rel (%p344) target = $region48
        $region47: #{tpu_custom_call.1} parent=11 // pred_region
          _
        $region48: #{tpu_custom_call.1} parent=11 // pred_fallthru
          _
      $region12: #{tpu_custom_call.1} parent=5 // pred_fallthru
        _
      %p347 = scmp.lt.s32.totalorder %s24, 2
      // Predicated region
      $region49: #{tpu_custom_call.1} parent=5 // pred_check
        %p348 = pneg %p347
      $region50: #{tpu_custom_call.1} parent=5 // pred_check_branch
        %350 = sbr.rel (%p348) target = $region52
      $region51: #{tpu_custom_call.1} parent=5 // pred_region
        // Predicated region
        $region53: #{tpu_custom_call.1} parent=51 // pred_check
          %p351 = pneg %p44
        $region54: #{tpu_custom_call.1} parent=51 // pred_check_branch
          %353 = sbr.rel (%p351) target = $region56
        $region55: #{tpu_custom_call.1} parent=51 // pred_region
          %s354 = sand.u32 %s34, 1
          %s355 = scalar_lea.sflag [#allocation3], %s354
          %s356 = sand.u32 %s34, 1
          %s357 = smul.addr %s356, 128
          %s358 = scalar_lea.vmem [#allocation2], %s357
          %s360 = ssub.s32 2048, 2048
          %361 = vsyncadd %s355, %s360
          %s362 = smul.addr %s24, 32
          %s363 = smul.addr %s362, 64
          %s364 = scalar_lea.hbm %s0, %s363
          %s365 = sshll.u32 %s358, 4
          %s366 = int_to_ptr.vmem [resolvable:$true] %s365
          %371 = dma.hbm_to_vmem [thread:$0]  %s364, 2048, %s366, %s355, 64, 64, 4
        $region56: #{tpu_custom_call.1} parent=51 // pred_fallthru
          _
      $region52: #{tpu_custom_call.1} parent=5 // pred_fallthru
        _
      %p372 = scmp.le.s32.totalorder 1, %s24
      %p373 = scmp.lt.s32.totalorder %s24, 3
      %p374 = pnand %p372, %p373
      %p375 = pneg %p374
      // Predicated region
      $region57: #{tpu_custom_call.1} parent=5 // pred_check
        _
      $region58: #{tpu_custom_call.1} parent=5 // pred_check_branch
        %377 = sbr.rel (%p374) target = $region60
      $region59: #{tpu_custom_call.1} parent=5 // pred_region
        %s378 = ssub.s32 %s24, 1
        %s379 = sand.u32 %s37, 1
        %s380 = scalar_lea.sflag [#allocation3], %s379
        %s381 = sand.u32 %s37, 1
        %s382 = smul.addr %s381, 128
        %s383 = scalar_lea.vmem [#allocation2], %s382
        // Predicated region
        $region61: #{tpu_custom_call.1} parent=59 // pred_check
          %p384 = pneg %p50
        $region62: #{tpu_custom_call.1} parent=59 // pred_check_branch
          %386 = sbr.rel (%p384) target = $region64
        $region63: #{tpu_custom_call.1} parent=59 // pred_region
          %387 = dma.done %s380, 2048
        $region64: #{tpu_custom_call.1} parent=59 // pred_fallthru
          _
        // Predicated region
        $region65: #{tpu_custom_call.1} parent=59 // pred_check
          %p388 = pneg %p92
        $region66: #{tpu_custom_call.1} parent=59 // pred_check_branch
          %390 = sbr.rel (%p388) target = $region68
        $region67: #{tpu_custom_call.1} parent=59 // pred_region
          %391 = dma.done [#allocation6], 1024
        $region68: #{tpu_custom_call.1} parent=59 // pred_fallthru
          _
        // Predicated region
        $region69: #{tpu_custom_call.1} parent=59 // pred_check
          %p392 = pneg %p134
        $region70: #{tpu_custom_call.1} parent=59 // pred_check_branch
          %394 = sbr.rel (%p392) target = $region72
        $region71: #{tpu_custom_call.1} parent=59 // pred_region
          %395 = dma.done [#allocation6], 2048
        $region72: #{tpu_custom_call.1} parent=59 // pred_fallthru
          _
        // Predicated region
        $region73: #{tpu_custom_call.1} parent=59 // pred_check
          %p396 = pneg %p176
        $region74: #{tpu_custom_call.1} parent=59 // pred_check_branch
          %398 = sbr.rel (%p396) target = $region76
        $region75: #{tpu_custom_call.1} parent=59 // pred_region
          %399 = dma.done [#allocation9], 1024
        $region76: #{tpu_custom_call.1} parent=59 // pred_fallthru
          _
        // Predicated region
        $region77: #{tpu_custom_call.1} parent=59 // pred_check
          %p400 = pneg %p218
        $region78: #{tpu_custom_call.1} parent=59 // pred_check_branch
          %402 = sbr.rel (%p400) target = $region80
        $region79: #{tpu_custom_call.1} parent=59 // pred_region
          %403 = dma.done [#allocation9], 2048
        $region80: #{tpu_custom_call.1} parent=59 // pred_fallthru
          _
        %s404 = sand.u32 %s37, 1
        %s405 = scalar_lea.sflag [#allocation3], %s404
        %s406 = sand.u32 %s37, 1
        %s407 = smul.addr %s406, 128
        %s408 = scalar_lea.vmem [#allocation2], %s407
        %p409 = pneg %p50
        %p410 = pneg %p47
        %p411 = pneg %p71
        %p412 = pneg %p68
        %p413 = pneg %p92
        %p414 = pneg %p89
        %p415 = pneg %p113
        %p416 = pneg %p110
        %p417 = pneg %p134
        %p418 = pneg %p131
        %p419 = pneg %p155
        %p420 = pneg %p152
        %p421 = pneg %p176
        %p422 = pneg %p173
        %p423 = pneg %p197
        %p424 = pneg %p194
        %p425 = pneg %p218
        %p426 = pneg %p215
        %p427 = pneg %p239
        %p428 = pneg %p236
        %p429 = pneg %p265
        %p430 = pneg %p262
        %s431 = sand.u32 %s252, 1
        %s432 = scalar_lea.sflag [#allocation4], %s431
        %s433 = sand.u32 %s252, 1
        %s434 = scalar_lea.vmem [#allocation11], %s433
        %v436 = vld [vmem:[%s383] sm:$0xf]
        %v437 = vld [vmem:[%s383 + $0x4] sm:$0xf]
        %v438 = vld [vmem:[%s383 + $0x8] sm:$0xf]
        %v439 = vld [vmem:[%s383 + $0xc] sm:$0xf]
        %v440 = vld [vmem:[%s383 + $0x10] sm:$0xf]
        %v441 = vld [vmem:[%s383 + $0x14] sm:$0xf]
        %v442 = vld [vmem:[%s383 + $0x18] sm:$0xf]
        %v443 = vld [vmem:[%s383 + $0x1c] sm:$0xf]
        %v444 = vld [vmem:[%s383 + $0x20] sm:$0xf]
        %v445 = vld [vmem:[%s383 + $0x24] sm:$0xf]
        %v446 = vld [vmem:[%s383 + $0x28] sm:$0xf]
        %v447 = vld [vmem:[%s383 + $0x2c] sm:$0xf]
        %v448 = vld [vmem:[%s383 + $0x30] sm:$0xf]
        %v449 = vld [vmem:[%s383 + $0x34] sm:$0xf]
        %v450 = vld [vmem:[%s383 + $0x38] sm:$0xf]
        %v451 = vld [vmem:[%s383 + $0x3c] sm:$0xf]
        %v452 = vld [vmem:[%s383 + $0x40] sm:$0xf]
        %v453 = vld [vmem:[%s383 + $0x44] sm:$0xf]
        %v454 = vld [vmem:[%s383 + $0x48] sm:$0xf]
        %v455 = vld [vmem:[%s383 + $0x4c] sm:$0xf]
        %v456 = vld [vmem:[%s383 + $0x50] sm:$0xf]
        %v457 = vld [vmem:[%s383 + $0x54] sm:$0xf]
        %v458 = vld [vmem:[%s383 + $0x58] sm:$0xf]
        %v459 = vld [vmem:[%s383 + $0x5c] sm:$0xf]
        %v460 = vld [vmem:[%s383 + $0x60] sm:$0xf]
        %v461 = vld [vmem:[%s383 + $0x64] sm:$0xf]
        %v462 = vld [vmem:[%s383 + $0x68] sm:$0xf]
        %v463 = vld [vmem:[%s383 + $0x6c] sm:$0xf]
        %v464 = vld [vmem:[%s383 + $0x70] sm:$0xf]
        %v465 = vld [vmem:[%s383 + $0x74] sm:$0xf]
        %v466 = vld [vmem:[%s383 + $0x78] sm:$0xf]
        %v467 = vld [vmem:[%s383 + $0x7c] sm:$0xf]
        %v468 = vld [vmem:[%s1] sm:$0x3]
        %v469 = vld [vmem:[#allocation5] sm:$0xf]
        %v470 = vld [vmem:[#allocation5 + $0x4] sm:$0xf]
        %v471 = vld [vmem:[#allocation5 + $0x8] sm:$0xf]
        %v472 = vld [vmem:[#allocation5 + $0xc] sm:$0xf]
        %v473 = vld [vmem:[#allocation5 + $0x10] sm:$0xf]
        %v474 = vld [vmem:[#allocation5 + $0x14] sm:$0xf]
        %v475 = vld [vmem:[#allocation5 + $0x18] sm:$0xf]
        %v476 = vld [vmem:[#allocation5 + $0x1c] sm:$0xf]
        %v477 = vld [vmem:[#allocation5 + $0x20] sm:$0xf]
        %v478 = vld [vmem:[#allocation5 + $0x24] sm:$0xf]
        %v479 = vld [vmem:[#allocation5 + $0x28] sm:$0xf]
        %v480 = vld [vmem:[#allocation5 + $0x2c] sm:$0xf]
        %v481 = vld [vmem:[#allocation5 + $0x30] sm:$0xf]
        %v482 = vld [vmem:[#allocation5 + $0x34] sm:$0xf]
        %v483 = vld [vmem:[#allocation5 + $0x38] sm:$0xf]
        %v484 = vld [vmem:[#allocation5 + $0x3c] sm:$0xf]
        %v485 = vld [vmem:[%s3] sm:$0x1]
        %v487 = vlaneseq
        %v488 = vshrl.u32 %v487, 7
        %v489 = vsub.s32 0, %v488
        %v490 = vrot.slane %v485, %v489
        %v524 = vunpack.c.l.b16 %v436
        %v525 = vunpack.c.l.b16 %v437
        %v526 = vunpack.c.l.b16 %v438
        %v527 = vunpack.c.l.b16 %v439
        %v528 = vunpack.c.l.b16 %v440
        %v529 = vunpack.c.l.b16 %v441
        %v530 = vunpack.c.l.b16 %v442
        %v531 = vunpack.c.l.b16 %v443
        %v532 = vunpack.c.l.b16 %v444
        %v533 = vunpack.c.l.b16 %v445
        %v534 = vunpack.c.l.b16 %v446
        %v535 = vunpack.c.l.b16 %v447
        %v536 = vunpack.c.l.b16 %v448
        %v537 = vunpack.c.l.b16 %v449
        %v538 = vunpack.c.l.b16 %v450
        %v539 = vunpack.c.l.b16 %v451
        %v540 = vunpack.c.l.b16 %v452
        %v541 = vunpack.c.l.b16 %v453
        %v542 = vunpack.c.l.b16 %v454
        %v543 = vunpack.c.l.b16 %v455
        %v544 = vunpack.c.l.b16 %v456
        %v545 = vunpack.c.l.b16 %v457
        %v546 = vunpack.c.l.b16 %v458
        %v547 = vunpack.c.l.b16 %v459
        %v548 = vunpack.c.l.b16 %v460
        %v549 = vunpack.c.l.b16 %v461
        %v550 = vunpack.c.l.b16 %v462
        %v551 = vunpack.c.l.b16 %v463
        %v552 = vunpack.c.l.b16 %v464
        %v553 = vunpack.c.l.b16 %v465
        %v554 = vunpack.c.l.b16 %v466
        %v555 = vunpack.c.l.b16 %v467
        %v556 = vpack.c.b16 %v525, %v524
        %v557 = vpack.c.b16 %v527, %v526
        %v558 = vpack.c.b16 %v529, %v528
        %v559 = vpack.c.b16 %v531, %v530
        %v560 = vpack.c.b16 %v533, %v532
        %v561 = vpack.c.b16 %v535, %v534
        %v562 = vpack.c.b16 %v537, %v536
        %v563 = vpack.c.b16 %v539, %v538
        %v564 = vpack.c.b16 %v541, %v540
        %v565 = vpack.c.b16 %v543, %v542
        %v566 = vpack.c.b16 %v545, %v544
        %v567 = vpack.c.b16 %v547, %v546
        %v568 = vpack.c.b16 %v549, %v548
        %v569 = vpack.c.b16 %v551, %v550
        %v570 = vpack.c.b16 %v553, %v552
        %v571 = vpack.c.b16 %v555, %v554
        %v604 = vunpack.c.l.b16 %v469
        %v605 = vunpack.c.l.b16 %v470
        %v606 = vunpack.c.l.b16 %v471
        %v607 = vunpack.c.l.b16 %v472
        %v608 = vunpack.c.l.b16 %v473
        %v609 = vunpack.c.l.b16 %v474
        %v610 = vunpack.c.l.b16 %v475
        %v611 = vunpack.c.l.b16 %v476
        %v612 = vunpack.c.l.b16 %v477
        %v613 = vunpack.c.l.b16 %v478
        %v614 = vunpack.c.l.b16 %v479
        %v615 = vunpack.c.l.b16 %v480
        %v616 = vunpack.c.l.b16 %v481
        %v617 = vunpack.c.l.b16 %v482
        %v618 = vunpack.c.l.b16 %v483
        %v619 = vunpack.c.l.b16 %v484
        %v620 = vpack.c.b16 %v605, %v604
        %v621 = vpack.c.b16 %v607, %v606
        %v622 = vpack.c.b16 %v609, %v608
        %v623 = vpack.c.b16 %v611, %v610
        %v624 = vpack.c.b16 %v613, %v612
        %v625 = vpack.c.b16 %v615, %v614
        %v626 = vpack.c.b16 %v617, %v616
        %v627 = vpack.c.b16 %v619, %v618
        %636 = vmatprep.subr.bf16.mxu0 0
        %637 = vmatpush1.bf16.msra.mxu0 %v620
        %638 = vmatprep.subr.bf16.mxu0 0
        %639 = vmatpush1.bf16.msra.mxu0 %v621
        %640 = vmatprep.subr.bf16.mxu0 0
        %641 = vmatpush1.bf16.msra.mxu0 %v622
        %642 = vmatprep.subr.bf16.mxu0 0
        %643 = vmatpush1.bf16.msra.mxu0 %v623
        %644 = vmatprep.subr.bf16.mxu0 0
        %645 = vmatpush1.bf16.msra.mxu0 %v624
        %646 = vmatprep.subr.bf16.mxu0 0
        %647 = vmatpush1.bf16.msra.mxu0 %v625
        %648 = vmatprep.subr.bf16.mxu0 0
        %649 = vmatpush1.bf16.msra.mxu0 %v626
        %650 = vmatprep.subr.bf16.mxu0 0
        %651 = vmatpush1.bf16.msra.mxu0 %v627
        %652 = vmatprep.subr.bf16.mxu0 0
        %653 = vmatpush1.bf16.msra.mxu0 0
        %654 = vmatprep.subr.bf16.mxu0 0
        %655 = vmatpush1.bf16.msra.mxu0 0
        %656 = vmatprep.subr.bf16.mxu0 0
        %657 = vmatpush1.bf16.msra.mxu0 0
        %658 = vmatprep.subr.bf16.mxu0 0
        %659 = vmatpush1.bf16.msra.mxu0 0
        %660 = vmatprep.subr.bf16.mxu0 0
        %661 = vmatpush1.bf16.msra.mxu0 0
        %662 = vmatprep.subr.bf16.mxu0 0
        %663 = vmatpush1.bf16.msra.mxu0 0
        %664 = vmatprep.subr.bf16.mxu0 0
        %665 = vmatpush1.bf16.msra.mxu0 0
        %666 = vmatprep.subr.bf16.mxu0 0
        %667 = vmatpush1.bf16.msra.mxu0 0
        %668 = vmatprep.mubr.bf16.mxu0 0
        %669 = vmatmul.mubr.bf16.gmra.mrb[0].mxu0 %v556
        %v670 = vpop.f32.mrb[0].mxu0
        %v671 = vadd.f32 %v490, %v670
        %v672 = vpop.f32.mrb[0].mxu0
        %v673 = vpop.f32.mrb[0].mxu0
        %v674 = vadd.f32 %v490, %v673
        %v675 = vpop.f32.mrb[0].mxu0
        %676 = vmatprep.mubr.bf16.mxu0 0
        %677 = vmatmul.mubr.bf16.gmra.mrb[0].mxu0 %v557
        %v678 = vpop.f32.mrb[0].mxu0
        %v679 = vadd.f32 %v490, %v678
        %v680 = vpop.f32.mrb[0].mxu0
        %v681 = vpop.f32.mrb[0].mxu0
        %v682 = vadd.f32 %v490, %v681
        %v683 = vpop.f32.mrb[0].mxu0
        %684 = vmatprep.mubr.bf16.mxu0 0
        %685 = vmatmul.mubr.bf16.gmra.mrb[0].mxu0 %v558
        %v686 = vpop.f32.mrb[0].mxu0
        %v687 = vadd.f32 %v490, %v686
        %v688 = vpop.f32.mrb[0].mxu0
        %v689 = vpop.f32.mrb[0].mxu0
        %v690 = vadd.f32 %v490, %v689
        %v691 = vpop.f32.mrb[0].mxu0
        %692 = vmatprep.mubr.bf16.mxu0 0
        %693 = vmatmul.mubr.bf16.gmra.mrb[0].mxu0 %v559
        %v694 = vpop.f32.mrb[0].mxu0
        %v695 = vadd.f32 %v490, %v694
        %v696 = vpop.f32.mrb[0].mxu0
        %v697 = vpop.f32.mrb[0].mxu0
        %v698 = vadd.f32 %v490, %v697
        %v699 = vpop.f32.mrb[0].mxu0
        %700 = vmatprep.mubr.bf16.mxu0 0
        %701 = vmatmul.mubr.bf16.gmra.mrb[0].mxu0 %v560
        %v702 = vpop.f32.mrb[0].mxu0
        %v703 = vadd.f32 %v490, %v702
        %v704 = vpop.f32.mrb[0].mxu0
        %v705 = vpop.f32.mrb[0].mxu0
        %v706 = vadd.f32 %v490, %v705
        %v707 = vpop.f32.mrb[0].mxu0
        %708 = vmatprep.mubr.bf16.mxu0 0
        %709 = vmatmul.mubr.bf16.gmra.mrb[0].mxu0 %v561
        %v710 = vpop.f32.mrb[0].mxu0
        %v711 = vadd.f32 %v490, %v710
        %v712 = vpop.f32.mrb[0].mxu0
        %v713 = vpop.f32.mrb[0].mxu0
        %v714 = vadd.f32 %v490, %v713
        %v715 = vpop.f32.mrb[0].mxu0
        %716 = vmatprep.mubr.bf16.mxu0 0
        %717 = vmatmul.mubr.bf16.gmra.mrb[0].mxu0 %v562
        %v718 = vpop.f32.mrb[0].mxu0
        %v719 = vadd.f32 %v490, %v718
        %v720 = vpop.f32.mrb[0].mxu0
        %v721 = vpop.f32.mrb[0].mxu0
        %v722 = vadd.f32 %v490, %v721
        %v723 = vpop.f32.mrb[0].mxu0
        %724 = vmatprep.mubr.bf16.mxu0 0
        %725 = vmatmul.mubr.bf16.gmra.mrb[0].mxu0 %v563
        %v726 = vpop.f32.mrb[0].mxu0
        %v727 = vadd.f32 %v490, %v726
        %v728 = vpop.f32.mrb[0].mxu0
        %v729 = vpop.f32.mrb[0].mxu0
        %v730 = vadd.f32 %v490, %v729
        %v731 = vpop.f32.mrb[0].mxu0
        %732 = vmatprep.mubr.bf16.mxu0 0
        %733 = vmatmul.mubr.bf16.gmra.mrb[0].mxu0 %v564
        %v734 = vpop.f32.mrb[0].mxu0
        %v735 = vadd.f32 %v490, %v734
        %v736 = vpop.f32.mrb[0].mxu0
        %v737 = vpop.f32.mrb[0].mxu0
        %v738 = vadd.f32 %v490, %v737
        %v739 = vpop.f32.mrb[0].mxu0
        %740 = vmatprep.mubr.bf16.mxu0 0
        %741 = vmatmul.mubr.bf16.gmra.mrb[0].mxu0 %v565
        %v742 = vpop.f32.mrb[0].mxu0
        %v743 = vadd.f32 %v490, %v742
        %v744 = vpop.f32.mrb[0].mxu0
        %v745 = vpop.f32.mrb[0].mxu0
        %v746 = vadd.f32 %v490, %v745
        %v747 = vpop.f32.mrb[0].mxu0
        %748 = vmatprep.mubr.bf16.mxu0 0
        %749 = vmatmul.mubr.bf16.gmra.mrb[0].mxu0 %v566
        %v750 = vpop.f32.mrb[0].mxu0
        %v751 = vadd.f32 %v490, %v750
        %v752 = vpop.f32.mrb[0].mxu0
        %v753 = vpop.f32.mrb[0].mxu0
        %v754 = vadd.f32 %v490, %v753
        %v755 = vpop.f32.mrb[0].mxu0
        %756 = vmatprep.mubr.bf16.mxu0 0
        %757 = vmatmul.mubr.bf16.gmra.mrb[0].mxu0 %v567
        %v758 = vpop.f32.mrb[0].mxu0
        %v759 = vadd.f32 %v490, %v758
        %v760 = vpop.f32.mrb[0].mxu0
        %v761 = vpop.f32.mrb[0].mxu0
        %v762 = vadd.f32 %v490, %v761
        %v763 = vpop.f32.mrb[0].mxu0
        %764 = vmatprep.mubr.bf16.mxu0 0
        %765 = vmatmul.mubr.bf16.gmra.mrb[0].mxu0 %v568
        %v766 = vpop.f32.mrb[0].mxu0
        %v767 = vadd.f32 %v490, %v766
        %v768 = vpop.f32.mrb[0].mxu0
        %v769 = vpop.f32.mrb[0].mxu0
        %v770 = vadd.f32 %v490, %v769
        %v771 = vpop.f32.mrb[0].mxu0
        %772 = vmatprep.mubr.bf16.mxu0 0
        %773 = vmatmul.mubr.bf16.gmra.mrb[0].mxu0 %v569
        %v774 = vpop.f32.mrb[0].mxu0
        %v775 = vadd.f32 %v490, %v774
        %v776 = vpop.f32.mrb[0].mxu0
        %v777 = vpop.f32.mrb[0].mxu0
        %v778 = vadd.f32 %v490, %v777
        %v779 = vpop.f32.mrb[0].mxu0
        %780 = vmatprep.mubr.bf16.mxu0 0
        %781 = vmatmul.mubr.bf16.gmra.mrb[0].mxu0 %v570
        %v782 = vpop.f32.mrb[0].mxu0
        %v783 = vadd.f32 %v490, %v782
        %v784 = vpop.f32.mrb[0].mxu0
        %v785 = vpop.f32.mrb[0].mxu0
        %v786 = vadd.f32 %v490, %v785
        %v787 = vpop.f32.mrb[0].mxu0
        %788 = vmatprep.mubr.bf16.mxu0 0
        %789 = vmatmul.mubr.bf16.gmra.mrb[0].mxu0 %v571
        %v790 = vpop.f32.mrb[0].mxu0
        %v791 = vadd.f32 %v490, %v790
        %v792 = vpop.f32.mrb[0].mxu0
        %v793 = vpop.f32.mrb[0].mxu0
        %v794 = vadd.f32 %v490, %v793
        %v795 = vpop.f32.mrb[0].mxu0
        %796 = vdwg.mxu0
        %v797 = vmax.f32 %v671, 0.0
        %v798 = vmax.f32 %v674, 0.0
        %v799 = vmax.f32 %v679, 0.0
        %v800 = vmax.f32 %v682, 0.0
        %v801 = vmax.f32 %v687, 0.0
        %v802 = vmax.f32 %v690, 0.0
        %v803 = vmax.f32 %v695, 0.0
        %v804 = vmax.f32 %v698, 0.0
        %v805 = vmax.f32 %v703, 0.0
        %v806 = vmax.f32 %v706, 0.0
        %v807 = vmax.f32 %v711, 0.0
        %v808 = vmax.f32 %v714, 0.0
        %v809 = vmax.f32 %v719, 0.0
        %v810 = vmax.f32 %v722, 0.0
        %v811 = vmax.f32 %v727, 0.0
        %v812 = vmax.f32 %v730, 0.0
        %v813 = vmax.f32 %v735, 0.0
        %v814 = vmax.f32 %v738, 0.0
        %v815 = vmax.f32 %v743, 0.0
        %v816 = vmax.f32 %v746, 0.0
        %v817 = vmax.f32 %v751, 0.0
        %v818 = vmax.f32 %v754, 0.0
        %v819 = vmax.f32 %v759, 0.0
        %v820 = vmax.f32 %v762, 0.0
        %v821 = vmax.f32 %v767, 0.0
        %v822 = vmax.f32 %v770, 0.0
        %v823 = vmax.f32 %v775, 0.0
        %v824 = vmax.f32 %v778, 0.0
        %v825 = vmax.f32 %v783, 0.0
        %v826 = vmax.f32 %v786, 0.0
        %v827 = vmax.f32 %v791, 0.0
        %v828 = vmax.f32 %v794, 0.0
        %v830 = vlaneseq
        %v831 = vshrl.u32 %v830, 7
        %v832 = vsub.s32 0, %v831
        %v833 = vrot.slane %v468, %v832
        %v834 = vlaneseq
        %v835 = vshrl.u32 %v834, 7
        %v836 = vsub.s32 1, %v835
        %v837 = vrot.slane %v468, %v836
        %840 = vmatprep.subr.mxu0 0.0
        %841 = vmatpush1.msra.mxu0 %v797
        %842 = vmatprep.subr.mxu0 0.0
        %843 = vmatpush1.msra.mxu0 %v798
        %844 = vmatprep.subr.mxu0 0.0
        %845 = vmatpush1.msra.mxu0 %v799
        %846 = vmatprep.subr.mxu0 0.0
        %847 = vmatpush1.msra.mxu0 %v800
        %848 = vmatprep.subr.mxu0 0.0
        %849 = vmatpush1.msra.mxu0 %v801
        %850 = vmatprep.subr.mxu0 0.0
        %851 = vmatpush1.msra.mxu0 %v802
        %852 = vmatprep.subr.mxu0 0.0
        %853 = vmatpush1.msra.mxu0 %v803
        %854 = vmatprep.subr.mxu0 0.0
        %855 = vmatpush1.msra.mxu0 %v804
        %856 = vmatprep.subr.mxu0 0.0
        %857 = vmatpush1.msra.mxu0 %v805
        %858 = vmatprep.subr.mxu0 0.0
        %859 = vmatpush1.msra.mxu0 %v806
        %860 = vmatprep.subr.mxu0 0.0
        %861 = vmatpush1.msra.mxu0 %v807
        %862 = vmatprep.subr.mxu0 0.0
        %863 = vmatpush1.msra.mxu0 %v808
        %864 = vmatprep.subr.mxu0 0.0
        %865 = vmatpush1.msra.mxu0 %v809
        %866 = vmatprep.subr.mxu0 0.0
        %867 = vmatpush1.msra.mxu0 %v810
        %868 = vmatprep.subr.mxu0 0.0
        %869 = vmatpush1.msra.mxu0 %v811
        %870 = vmatprep.subr.mxu0 0.0
        %871 = vmatpush1.msra.mxu0 %v812
        %872 = vmatprep.subr.mxu0 0.0
        %873 = vmatpush1.msra.mxu0 %v813
        %874 = vmatprep.subr.mxu0 0.0
        %875 = vmatpush1.msra.mxu0 %v814
        %876 = vmatprep.subr.mxu0 0.0
        %877 = vmatpush1.msra.mxu0 %v815
        %878 = vmatprep.subr.mxu0 0.0
        %879 = vmatpush1.msra.mxu0 %v816
        %880 = vmatprep.subr.mxu0 0.0
        %881 = vmatpush1.msra.mxu0 %v817
        %882 = vmatprep.subr.mxu0 0.0
        %883 = vmatpush1.msra.mxu0 %v818
        %884 = vmatprep.subr.mxu0 0.0
        %885 = vmatpush1.msra.mxu0 %v819
        %886 = vmatprep.subr.mxu0 0.0
        %887 = vmatpush1.msra.mxu0 %v820
        %888 = vmatprep.subr.mxu0 0.0
        %889 = vmatpush1.msra.mxu0 %v821
        %890 = vmatprep.subr.mxu0 0.0
        %891 = vmatpush1.msra.mxu0 %v822
        %892 = vmatprep.subr.mxu0 0.0
        %893 = vmatpush1.msra.mxu0 %v823
        %894 = vmatprep.subr.mxu0 0.0
        %895 = vmatpush1.msra.mxu0 %v824
        %896 = vmatprep.subr.mxu0 0.0
        %897 = vmatpush1.msra.mxu0 %v825
        %898 = vmatprep.subr.mxu0 0.0
        %899 = vmatpush1.msra.mxu0 %v826
        %900 = vmatprep.subr.mxu0 0.0
        %901 = vmatpush1.msra.mxu0 %v827
        %902 = vmatprep.subr.mxu0 0.0
        %903 = vmatpush1.msra.mxu0 %v828
        %904 = vmatprep.mubr.f32.mxu0 %v837
        %905 = vmatmul.mubr.f32.gmra.mrb[0].mxu0 %v833
        %v906 = vpop.f32.mrb[0].mxu0
        %v907 = vadd.f32 0.0, %v906
        %v908 = vpop.f32.mrb[0].mxu0
        %909 = vdwg.mxu0
        %v910 = vld [vmem:[#allocation7] sm:$0xff]
        %v911 = vld [vmem:[#allocation7 + $0x8] sm:$0xff]
        %v912 = vld [vmem:[#allocation7 + $0x10] sm:$0xff]
        %v913 = vld [vmem:[#allocation7 + $0x18] sm:$0xff]
        %v914 = vld [vmem:[#allocation7 + $0x20] sm:$0xff]
        %v915 = vld [vmem:[#allocation7 + $0x28] sm:$0xff]
        %v916 = vld [vmem:[#allocation7 + $0x30] sm:$0xff]
        %v917 = vld [vmem:[#allocation7 + $0x38] sm:$0xff]
        %v918 = vld [vmem:[#allocation7 + $0x40] sm:$0xff]
        %v919 = vld [vmem:[#allocation7 + $0x48] sm:$0xff]
        %v920 = vld [vmem:[#allocation7 + $0x50] sm:$0xff]
        %v921 = vld [vmem:[#allocation7 + $0x58] sm:$0xff]
        %v922 = vld [vmem:[#allocation7 + $0x60] sm:$0xff]
        %v923 = vld [vmem:[#allocation7 + $0x68] sm:$0xff]
        %v924 = vld [vmem:[#allocation7 + $0x70] sm:$0xff]
        %v925 = vld [vmem:[#allocation7 + $0x78] sm:$0xff]
        %v926 = vld [vmem:[%s5] sm:$0x1]
        %927 = vmatprep.subr.mxu0 0.0
        %928 = vmatpush1.msra.mxu0 %v910
        %929 = vmatprep.subr.mxu0 0.0
        %930 = vmatpush1.msra.mxu0 %v911
        %931 = vmatprep.subr.mxu0 0.0
        %932 = vmatpush1.msra.mxu0 %v912
        %933 = vmatprep.subr.mxu0 0.0
        %934 = vmatpush1.msra.mxu0 %v913
        %935 = vmatprep.subr.mxu0 0.0
        %936 = vmatpush1.msra.mxu0 %v914
        %937 = vmatprep.subr.mxu0 0.0
        %938 = vmatpush1.msra.mxu0 %v915
        %939 = vmatprep.subr.mxu0 0.0
        %940 = vmatpush1.msra.mxu0 %v916
        %941 = vmatprep.subr.mxu0 0.0
        %942 = vmatpush1.msra.mxu0 %v917
        %943 = vmatprep.subr.mxu0 0.0
        %944 = vmatpush1.msra.mxu0 %v918
        %945 = vmatprep.subr.mxu0 0.0
        %946 = vmatpush1.msra.mxu0 %v919
        %947 = vmatprep.subr.mxu0 0.0
        %948 = vmatpush1.msra.mxu0 %v920
        %949 = vmatprep.subr.mxu0 0.0
        %950 = vmatpush1.msra.mxu0 %v921
        %951 = vmatprep.subr.mxu0 0.0
        %952 = vmatpush1.msra.mxu0 %v922
        %953 = vmatprep.subr.mxu0 0.0
        %954 = vmatpush1.msra.mxu0 %v923
        %955 = vmatprep.subr.mxu0 0.0
        %956 = vmatpush1.msra.mxu0 %v924
        %957 = vmatprep.subr.mxu0 0.0
        %958 = vmatpush1.msra.mxu0 %v925
        %959 = vmatprep.subr.mxu0 0.0
        %960 = vmatpush1.msra.mxu0 0.0
        %961 = vmatprep.subr.mxu0 0.0
        %962 = vmatpush1.msra.mxu0 0.0
        %963 = vmatprep.subr.mxu0 0.0
        %964 = vmatpush1.msra.mxu0 0.0
        %965 = vmatprep.subr.mxu0 0.0
        %966 = vmatpush1.msra.mxu0 0.0
        %967 = vmatprep.subr.mxu0 0.0
        %968 = vmatpush1.msra.mxu0 0.0
        %969 = vmatprep.subr.mxu0 0.0
        %970 = vmatpush1.msra.mxu0 0.0
        %971 = vmatprep.subr.mxu0 0.0
        %972 = vmatpush1.msra.mxu0 0.0
        %973 = vmatprep.subr.mxu0 0.0
        %974 = vmatpush1.msra.mxu0 0.0
        %975 = vmatprep.subr.mxu0 0.0
        %976 = vmatpush1.msra.mxu0 0.0
        %977 = vmatprep.subr.mxu0 0.0
        %978 = vmatpush1.msra.mxu0 0.0
        %979 = vmatprep.subr.mxu0 0.0
        %980 = vmatpush1.msra.mxu0 0.0
        %981 = vmatprep.subr.mxu0 0.0
        %982 = vmatpush1.msra.mxu0 0.0
        %983 = vmatprep.subr.mxu0 0.0
        %984 = vmatpush1.msra.mxu0 0.0
        %985 = vmatprep.subr.mxu0 0.0
        %986 = vmatpush1.msra.mxu0 0.0
        %987 = vmatprep.subr.mxu0 0.0
        %988 = vmatpush1.msra.mxu0 0.0
        %989 = vmatprep.subr.mxu0 0.0
        %990 = vmatpush1.msra.mxu0 0.0
        %991 = vmatprep.mubr.f32.mxu0 0.0
        %992 = vmatmul.mubr.f32.gmra.mrb[0].mxu0 %v907
        %v993 = vpop.f32.mrb[0].mxu0
        %v994 = vadd.f32 %v926, %v993
        %v995 = vpop.f32.mrb[0].mxu0
        %996 = vdwg.mxu0
        %v997 = vlaneseq
        %v998 = vand.u32 %v997, 127
        %v999 = vcvt.s32.f32 %v998
        %vm1000 = vcmp.lt.f32.partialorder %v999, 5.0
        %v1001 = vsel %vm1000, %v994, -3.4028235e+38
        %1002 = vst [vmem:[%s434] sm:$0x1] %v1001
        %s1003 = sand.u32 %s252, 1
        %s1004 = scalar_lea.sflag [#allocation4], %s1003
        %s1005 = sand.u32 %s252, 1
        %s1006 = scalar_lea.vmem [#allocation11], %s1005
        // Predicated region
        $region81: #{tpu_custom_call.1} parent=59 // pred_check
          %p1007 = pneg %p262
        $region82: #{tpu_custom_call.1} parent=59 // pred_check_branch
          %1009 = sbr.rel (%p1007) target = $region84
        $region83: #{tpu_custom_call.1} parent=59 // pred_region
          %s1011 = ssub.s32 16, 16
          %1012 = vsyncadd %s1004, %s1011
          %s1013 = smul.addr %s29, 16
          %s1014 = scalar_lea.hbm %s10, %s1013
          %s1016 = sshll.u32 %s1006, 4
          %s1017 = int_to_ptr.vmem [resolvable:$true] %s1016
          %1019 = dma.vmem_to_hbm [thread:$0]  %s1017, 16, %s1014, %s1004
        $region84: #{tpu_custom_call.1} parent=59 // pred_fallthru
          _
      $region60: #{tpu_custom_call.1} parent=5 // pred_fallthru
        _
      %p1020 = scmp.le.s32.totalorder 2, %s24
      // Predicated region
      $region85: #{tpu_custom_call.1} parent=5 // pred_check
        %p1021 = pneg %p1020
      $region86: #{tpu_custom_call.1} parent=5 // pred_check_branch
        %1023 = sbr.rel (%p1021) target = $region88
      $region87: #{tpu_custom_call.1} parent=5 // pred_region
        %s1024 = ssub.s32 %s24, 2
        // Predicated region
        $region89: #{tpu_custom_call.1} parent=87 // pred_check
          %p1025 = pneg %p268
        $region90: #{tpu_custom_call.1} parent=87 // pred_check_branch
          %1027 = sbr.rel (%p1025) target = $region92
        $region91: #{tpu_custom_call.1} parent=87 // pred_region
          %s1028 = sand.u32 %s253, 1
          %s1029 = scalar_lea.sflag [#allocation4], %s1028
          %s1030 = sand.u32 %s253, 1
          %s1031 = scalar_lea.vmem [#allocation11], %s1030
          %1032 = dma.done %s1029, 16
        $region92: #{tpu_custom_call.1} parent=87 // pred_fallthru
          _
      $region88: #{tpu_custom_call.1} parent=5 // pred_fallthru
        _
    $region6: #{tpu_custom_call.1} parent=1 // loop_footer
      %s28 = sadd.s32 1, %s24
    $region7: #{tpu_custom_call.1} parent=1 // loop_footer_branch
      %23 = sbr.rel target = $region3
    $region8: #{tpu_custom_call.1} parent=1 // loop_exit
      _
    %1033 = vsyncpa [#allocation3], 1
    %s1034 = scalar_lea.sflag [#allocation3], 1
    %1035 = vsyncpa %s1034, 1
    %1036 = vsyncpa [#allocation6], 1
    %1037 = vsyncpa [#allocation9], 1
    %1038 = vsyncpa [#allocation4], 1
    %s1039 = scalar_lea.sflag [#allocation4], 1
    %1040 = vsyncpa %s1039, 1

</llo_original>
